<compile_context>
chip_gen: v7x
topology: tpu7x:2x2x1
jax: 0.10.0
libtpu: 0.0.40
codegen_flags: <defaults>
</compile_context>

<pallas_src>
import math

import jax
import jax.numpy as jnp
from jax.experimental import pallas as pl
from jax.experimental.pallas import tpu as pltpu


def _drop_path_kernel_native(s_ref, x_ref, o_ref):
    # s_ref: (TB, 1) f32; x_ref / o_ref: (TB, TC) in x.dtype.
    # Cast the scale once so bf16/f16 inputs multiply at native width
    # (v6e/v7x have a bf16 VALU); f32 inputs are unchanged.
    o_ref[...] = x_ref[...] * s_ref[...].astype(o_ref.dtype)


def _drop_path_kernel_promote(s_ref, x_ref, o_ref):
    # fp8 / int inputs: do the multiply in f32 and cast back on store.
    o_ref[...] = (x_ref[...].astype(jnp.float32) * s_ref[...]).astype(o_ref.dtype)


def _sublane_pack(itemsize):
    return max(8, 32 // itemsize)


def _padded_block_bytes(rows, cols, itemsize):
    sub = _sublane_pack(itemsize)
    return (pl.cdiv(rows, sub) * sub) * (pl.cdiv(cols, 128) * 128) * itemsize


def _default_tile_bytes():
    """2 MiB reaches ~85% of HBM roofline on v5e/v6e and keeps the pipeline
    far below v5e's 16 MiB scoped-VMEM default; a v7x-class core (64 MiB
    VMEM, ~3.2 TB/s HBM) wants larger tiles to amortize per-step overhead."""
    try:
        info = pltpu.get_tpu_info()
        vmem = getattr(info, "vmem_capacity_bytes", None)
        if vmem is not None and vmem <= (96 << 20):   # v7x-class (64 MiB/TC)
            return 6 << 20
    except Exception:
        pass
    return 2 << 20


def _pick_blocks(B, L, itemsize, tile_bytes):
    """Choose (TB, TC) for the (B, L) view.

    TC: lane tile -- full extent when L < 128, otherwise a multiple of 128
        (a divisor of L when one exists) so stores are unmasked `vst` except
        possibly the final partial lane tile of each row.
    TB: batch (sublane) tile -- fills the remaining tile budget; a multiple
        of the dtype's sublane pack, or the full batch extent.
    """
    tile_elems = max(1, tile_bytes // itemsize)
    sub = _sublane_pack(itemsize)

    if L < 128:
        TC = L                                    # full extent (legal; tiny slab)
    else:
        cap = min(L, tile_elems, 32 * 1024)
        cap = max(128, cap - cap % 128)
        TC = 128
        if L % 128 == 0:
            for c in range(cap, 127, -128):       # prefer a divisor of L
                if L % c == 0:
                    TC = c
                    break
        else:
            TC = cap                              # last lane tile per row masked

    tb_budget = max(1, tile_elems // TC)
    if tb_budget >= B:
        TB = B
    else:
        TB = min(max(sub, (tb_budget // sub) * sub), B)

    # v7x megacore: make sure big inputs produce >= 2 grid steps so both
    # TensorCores get work (no-op on single-TC v5e/v6e).
    if pl.cdiv(B, TB) * pl.cdiv(L, TC) == 1 and B * L * itemsize >= (1 << 20):
        if TB >= 2 * sub:
            TB = max(sub, (TB // 2 // sub) * sub)
        elif TC >= 256:
            TC = max(128, pl.cdiv(pl.cdiv(TC, 2), 128) * 128)

    return TB, TC


def drop_path_pallas(x, drop_prob: float = 0.0, training: bool = False, *,
                     key=None, tile_bytes=None, donate_x: bool = False):
    """timm-style drop_path: out = x / keep_prob * floor(keep_prob + U[0,1)),
    with the random tensor drawn per batch sample and broadcast over the rest."""
    if drop_prob == 0.0 or not training:
        return x
    if key is None:
        raise ValueError("key required when training with drop_prob > 0")

    keep_prob = 1.0 - drop_prob
    B = x.shape[0]
    L = int(math.prod(x.shape[1:]))               # prod of () == 1 for 1-D x

    # Per-sample Bernoulli(keep_prob) mask, drawn in f32 so a low-precision x
    # dtype never quantizes the keep probability.
    u = jax.random.uniform(key, (B,), dtype=jnp.float32)
    scale = (jnp.floor(keep_prob + u) / keep_prob).astype(jnp.float32)
    scale = scale.reshape(B, 1)

    itemsize = x.dtype.itemsize
    if tile_bytes is None:
        tile_bytes = _default_tile_bytes()
    TB, TC = _pick_blocks(B, L, itemsize, tile_bytes)

    xv = x.reshape(B, L)
    grid = (pl.cdiv(B, TB), pl.cdiv(L, TC))

    # Explicit VMEM budget from the *realized* (layout-padded) blocks:
    # double-buffered input + output + scale, plus headroom for internal
    # scratch.  Keeps the largest safe tile on every generation (v5e's
    # scoped default is only 16 MiB).
    blk = _padded_block_bytes(TB, TC, itemsize)
    sblk = _padded_block_bytes(TB, 1, 4)
    vmem_limit = min(4 * blk + 2 * sblk + (4 << 20), 128 << 20)

    native = jnp.issubdtype(x.dtype, jnp.floating) and itemsize >= 2
    kernel = _drop_path_kernel_native if native else _drop_path_kernel_promote

    out = pl.pallas_call(
        kernel,
        out_shape=jax.ShapeDtypeStruct((B, L), x.dtype),
        grid=grid,
        in_specs=[pl.BlockSpec((TB, 1), lambda i, j: (i, 0)),
                  pl.BlockSpec((TB, TC), lambda i, j: (i, j))],
        out_specs=pl.BlockSpec((TB, TC), lambda i, j: (i, j)),
        compiler_params=pltpu.CompilerParams(
            dimension_semantics=("parallel", "parallel"),
            vmem_limit_bytes=int(vmem_limit)),
        cost_estimate=pl.CostEstimate(
            flops=B * L, transcendentals=0,
            bytes_accessed=2 * B * L * itemsize + B * 4),
        # Optional HBM-footprint win when the caller no longer needs x:
        # alias x (input index 1; the scale is input 0) into the output.
        input_output_aliases=({1: 0} if donate_x else {}),
    )(scale, xv)

    return out.reshape(x.shape)


if __name__ == "__main__":
    key = jax.random.PRNGKey(0)
    (kx, kmask, kx2, kmask2,
     kx3, kmask3, kx4, kmask4) = jax.random.split(key, 8)

    drop_prob = 0.5
    keep_prob = 1.0 - drop_prob

    # --- small ViT-like shape: batch=2, seq=8, hidden=32 ---
    B, N, D = 2, 8, 32
    x = jax.random.normal(kx, (B, N, D), dtype=jnp.float32)

    u = jax.random.uniform(kmask, (B,), dtype=jnp.float32)
    mask = jnp.floor(keep_prob + u)
    ref = x / keep_prob * mask[:, None, None]

    # eval mode / p == 0: identity path
    out_eval = drop_path_pallas(x, drop_prob=0.0, training=False)
    assert out_eval.shape == x.shape

    # training mode, f32
    out = jax.block_until_ready(
        drop_path_pallas(x, drop_prob=drop_prob, training=True, key=kmask))
    assert out.shape == x.shape and out.dtype == x.dtype
    assert jnp.allclose(out, ref, atol=1e-6), "f32 mismatch vs reference"

    # training mode, bf16 (native-width multiply path)
    xb = x.astype(jnp.bfloat16)
    outb = jax.block_until_ready(
        drop_path_pallas(xb, drop_prob=drop_prob, training=True, key=kmask))
    refb = xb.astype(jnp.float32) * (mask / keep_prob)[:, None, None]
    assert outb.dtype == jnp.bfloat16
    assert jnp.allclose(outb.astype(jnp.float32), refb, atol=1e-2, rtol=1e-2), \
        "bf16 mismatch vs reference"

    # larger slab with a tiny tile budget: exercises the lane-tiled
    # multi-block path and the realized-block VMEM sizing.
    B2, N2, D2 = 2, 256, 384
    x2 = jax.random.normal(kx2, (B2, N2, D2), dtype=jnp.float32)
    u2 = jax.random.uniform(kmask2, (B2,), dtype=jnp.float32)
    mask2 = jnp.floor(keep_prob + u2)
    ref2 = x2 / keep_prob * mask2[:, None, None]
    out2 = jax.block_until_ready(
        drop_path_pallas(x2, drop_prob=drop_prob, training=True, key=kmask2,
                         tile_bytes=8 * 1024))
    assert jnp.allclose(out2, ref2, atol=1e-6), "tiled-path mismatch"

    # per-sample slab not a multiple of 128 lanes: partial last lane tile.
    B3 = 4
    x3 = jax.random.normal(kx3, (B3, 7, 33), dtype=jnp.float32)   # L = 231
    u3 = jax.random.uniform(kmask3, (B3,), dtype=jnp.float32)
    mask3 = jnp.floor(keep_prob + u3)
    ref3 = x3 / keep_prob * mask3[:, None, None]
    out3 = jax.block_until_ready(
        drop_path_pallas(x3, drop_prob=drop_prob, training=True, key=kmask3))
    assert jnp.allclose(out3, ref3, atol=1e-6), "ragged-lane mismatch"

    # degenerate 1-D input (L == 1): batch-fused block, full-extent lanes.
    B4 = 16
    x4 = jax.random.normal(kx4, (B4,), dtype=jnp.float32)
    u4 = jax.random.uniform(kmask4, (B4,), dtype=jnp.float32)
    mask4 = jnp.floor(keep_prob + u4)
    ref4 = x4 / keep_prob * mask4
    out4 = jax.block_until_ready(
        drop_path_pallas(x4, drop_prob=drop_prob, training=True, key=kmask4))
    assert jnp.allclose(out4, ref4, atol=1e-6), "1-D mismatch"

    print("KERNEL_OK")
</pallas_src>

<mosaic_0001>
module attributes {stable_mosaic.version = 11 : i64} {
  func.func @_drop_path_kernel_native(%arg0: i32, %arg1: i32, %arg2: memref<2x1xf32, #tpu.memory_space<vmem>>, %arg3: memref<2x256xf32, #tpu.memory_space<vmem>>, %arg4: memref<2x256xf32, #tpu.memory_space<vmem>>) attributes {dimension_semantics = [#tpu.dimension_semantics<parallel>, #tpu.dimension_semantics<parallel>], iteration_bounds = array<i64: 1, 1>, scalar_prefetch = 0 : i64, scratch_operands = 0 : i64, tpu.core_type = #tpu.core_type<tc>, window_params = [{transform_indices = @transform_0, window_bounds = array<i64: 2, 1>}, {transform_indices = @transform_1, window_bounds = array<i64: 2, 256>}, {transform_indices = @transform_2, window_bounds = array<i64: 2, 256>}]} {
    %c0 = arith.constant 0 : index
    %c0_0 = arith.constant 0 : index
    %0 = vector.load %arg3[%c0, %c0_0] : memref<2x256xf32, #tpu.memory_space<vmem>>, vector<2x256xf32>
    %c0_1 = arith.constant 0 : index
    %c0_2 = arith.constant 0 : index
    %1 = vector.load %arg2[%c0_1, %c0_2] : memref<2x1xf32, #tpu.memory_space<vmem>>, vector<2x1xf32>
    %2 = vector.broadcast %1 : vector<2x1xf32> to vector<2x256xf32>
    %3 = arith.mulf %0, %2 : vector<2x256xf32>
    %c0_3 = arith.constant 0 : index
    %c0_4 = arith.constant 0 : index
    %4 = vector.load %arg4[%c0_3, %c0_4] : memref<2x256xf32, #tpu.memory_space<vmem>>, vector<2x256xf32>
    tpu.vector_store %arg4[%c0_3, %c0_4], %3 {strides = array<i32>} : memref<2x256xf32, #tpu.memory_space<vmem>>, vector<2x256xf32>,
    return
  }
  func.func @transform_0(%arg0: i32, %arg1: i32) -> (i32, i32) {
    %c0_i32 = arith.constant 0 : i32
    %c0_i32_0 = arith.constant 0 : i32
    return %arg0, %c0_i32 : i32, i32
  }
  func.func @transform_1(%arg0: i32, %arg1: i32) -> (i32, i32) {
    %c0_i32 = arith.constant 0 : i32
    return %arg0, %arg1 : i32, i32
  }
  func.func @transform_2(%arg0: i32, %arg1: i32) -> (i32, i32) {
    %c0_i32 = arith.constant 0 : i32
    return %arg0, %arg1 : i32, i32
  }
}

</mosaic_0001>

<llo_original>
// kernel: tpu_custom_call.1
$region0: #{tpu_custom_call.1}
  #allocation0 [shape = 'u32[]', space=smem, size = 0x4, offset = 0x4, fixed_abs, tag = 'smem constant byte address 0x4 - core index']
  #allocation1 [shape = 'u32[144,128]{1,0:T(1,128)}', space=vmem, size = 0x12000, scoped, tag = 'internal scratch']
  %s0 = inlined_call_operand.vmem [shape: f32[2,1], index: 0, kind: input, shape index: {}]
  %s1 = inlined_call_operand.vmem [shape: f32[2,256], index: 1, kind: input, shape index: {}]
  %s2 = inlined_call_operand.hbm [shape: f32[2,256], index: 2, kind: output, shape index: {}]
  %s3 = sld [smem:[#allocation0]]
  $region18: #{tpu_custom_call.1} parent=0
    _
  %s5 = ssub.s32 1, %s3
  %s6 = scalar_select 0, %s5, %s3
  $region1: #{tpu_custom_call.1} parent=0
    #allocation2 [shape = 'u8[2048]{0}', space=vmem, size = 0x800, scoped, tag = 'output window, operand 0, single buffered']
    #allocation3 [shape = 's32[1]{0}', space=sflag, size = 0x4, scoped, tag = 'scoped memory for tpu_custom_call.1']
    %7 = vsyncpa [#allocation3], 0
    // Predicated region
    $region2: #{tpu_custom_call.1} parent=1 // pred_check
      _
    $region3: #{tpu_custom_call.1} parent=1 // pred_check_branch
      %9 = sbr.rel (0) target = $region5
    $region4: #{tpu_custom_call.1} parent=1 // pred_region
      _
    $region5: #{tpu_custom_call.1} parent=1 // pred_fallthru
      _
    // Predicated region
    $region6: #{tpu_custom_call.1} parent=1 // pred_check
      _
    $region7: #{tpu_custom_call.1} parent=1 // pred_check_branch
      %11 = sbr.rel (0) target = $region9
    $region8: #{tpu_custom_call.1} parent=1 // pred_region
      _
    $region9: #{tpu_custom_call.1} parent=1 // pred_fallthru
      _
    %v12 = vld [vmem:[%s1] sm:$0xf]
    %v13 = vld [vmem:[%s0] sm:$0x3]
    %15 = vset.pattern.permute.xlu0 0
    %16 = vperm.xlu0 %15, %v13
    %v17 = vpop.permute.xlu0 %16
    %v19 = vunpack.c.l.s4 269488144
    %v20 = vunpack.c.0.s8 %v19
    %v21 = vlaneseq
    %v22 = vshrl.u32 %v21, 7
    %v23 = vsub.s32 %v20, %v22
    %v24 = vrot.slane %v17, %v23
    %v26 = vmul.f32 %v12, %v24
    %27 = vst [vmem:[#allocation2] sm:$0xf] %v26
    // Predicated region
    $region10: #{tpu_custom_call.1} parent=1 // pred_check
      _
    $region11: #{tpu_custom_call.1} parent=1 // pred_check_branch
      %29 = sbr.rel (0) target = $region13
    $region12: #{tpu_custom_call.1} parent=1 // pred_region
      %s31 = ssub.s32 64, 64
      %32 = vsyncadd [#allocation3], %s31
      %s34 = sshll.u32 [#allocation2], 4
      %s35 = int_to_ptr.vmem [resolvable:$true] %s34
      %37 = dma.vmem_to_hbm [thread:$0]  %s35, 64, %s2, [#allocation3]
    $region13: #{tpu_custom_call.1} parent=1 // pred_fallthru
      _
    // Predicated region
    $region14: #{tpu_custom_call.1} parent=1 // pred_check
      _
    $region15: #{tpu_custom_call.1} parent=1 // pred_check_branch
      %39 = sbr.rel (0) target = $region17
    $region16: #{tpu_custom_call.1} parent=1 // pred_region
      %40 = dma.done [#allocation3], 64
    $region17: #{tpu_custom_call.1} parent=1 // pred_fallthru
      _
    %41 = vsyncpa [#allocation3], 1

</llo_original>
